<compile_context>
chip_gen: v6e
topology: v6e:2x2x1
jax: 0.10.0
libtpu: 0.0.40
codegen_flags: <defaults>
</compile_context>

<pallas_src>
import functools
import math

import jax
import jax.numpy as jnp
from jax.experimental import pallas as pl
from jax.experimental.pallas import tpu as pltpu


_GELU_C = math.sqrt(2.0 / math.pi)
_LANE = 128
_RESIDENT_WEIGHT_BUDGET = 32 << 20   # single-buffered bf16 W1+W2 bytes kept resident


def _round_up(x, m):
    return ((x + m - 1) // m) * m


def _device_kind():
    try:
        return jax.devices()[0].device_kind.lower()
    except Exception:
        return ""


def _gelu_tanh(x):
    # tanh-approximate GELU (tanh runs on the EUP slot).  nn.GELU() default is
    # erf-exact; max abs deviation of the tanh form is ~3e-4.
    # TODO(synk): switch to exact erf-GELU once lax.erf reliably lowers in Mosaic.
    return 0.5 * x * (1.0 + jnp.tanh(_GELU_C * (x + 0.044715 * x * x * x)))


def _ffn_kernel(x_ref, w1_ref, b1_ref, w2_ref, b2_ref, out_ref, acc_ref, *,
                epi_dtype):
    # x_ref:   (TM, Kp)  compute dtype (bf16)
    # w1_ref:  (Kp, TH)  compute dtype
    # b1_ref:  (1, TH)   f32
    # w2_ref:  (TH, Kp)  compute dtype
    # b2_ref:  (1, Kp)   f32            (resident, single-buffered)
    # out_ref: (TM, Kp)  out dtype
    # acc_ref: (TM, Kp)  f32 scratch, accumulates over the hidden-tile axis
    hi = pl.program_id(1)

    @pl.when(hi == 0)
    def _():
        acc_ref[...] = jnp.zeros_like(acc_ref)

    # (TM, Kp) @ (Kp, TH) on the MXU with f32 accumulation.
    h = jnp.dot(x_ref[...], w1_ref[...], preferred_element_type=jnp.float32)
    h = (h + b1_ref[...]).astype(epi_dtype)        # bias add in f32, then epilogue dtype
    h = _gelu_tanh(h).astype(w2_ref.dtype)         # GELU (bf16 on v6e/v7x, f32 on v5e)
    # Accumulate this hidden-dim chunk's contribution into the f32 scratch.
    acc_ref[...] += jnp.dot(h, w2_ref[...], preferred_element_type=jnp.float32)

    @pl.when(hi == pl.num_programs(1) - 1)
    def _():
        out_ref[...] = (acc_ref[...] + b2_ref[...]).astype(out_ref.dtype)


def pack_ffn_params(lin1_w, lin1_b, lin2_w, lin2_b, *,
                    compute_dtype=jnp.bfloat16):
    """Pre-pack FFN weights once (hoist out of the per-call path):
    transpose to (in, out), cast to the MXU compute dtype and zero-pad to
    lane-dense 128-multiples.  Zero padding is mathematically inert
    (zero rows/cols, GELU(0) = 0)."""
    hidden, dim = lin1_w.shape
    Kp = _round_up(dim, _LANE)
    Hp0 = _round_up(hidden, _LANE)

    # Hidden tile: keep both weights fully resident when they fit the budget,
    # otherwise stream (Kp, TH)/(TH, Kp) tiles along a second grid axis
    # (double-buffered streamed tiles capped at ~16 MiB total).
    if 4 * Kp * Hp0 <= _RESIDENT_WEIGHT_BUDGET:
        TH = Hp0
    else:
        TH = min(Hp0, max(_LANE, ((2 << 20) // Kp) // _LANE * _LANE))
    Hp = _round_up(hidden, TH)

    w1 = lin1_w.astype(compute_dtype).T            # (dim, hidden)
    w2 = lin2_w.astype(compute_dtype).T            # (hidden, dim)
    b1 = lin1_b.astype(jnp.float32)
    b2 = lin2_b.astype(jnp.float32)
    if Kp != dim or Hp != hidden:
        w1 = jnp.pad(w1, ((0, Kp - dim), (0, Hp - hidden)))
        w2 = jnp.pad(w2, ((0, Hp - hidden), (0, Kp - dim)))
    if Hp != hidden:
        b1 = jnp.pad(b1, (0, Hp - hidden))
    if Kp != dim:
        b2 = jnp.pad(b2, (0, Kp - dim))

    return dict(w1=w1, b1=b1.reshape(1, Hp), w2=w2, b2=b2.reshape(1, Kp),
                dim=dim, hidden=hidden, Kp=Kp, Hp=Hp, TH=TH,
                compute_dtype=compute_dtype)


def _row_tile(m, *, streaming, kind):
    is_v7 = "v7" in kind
    is_v5e = ("v5" in kind) and ("v5p" not in kind)
    if streaming:
        # Weights stream from HBM: pick TM so arithmetic intensity (~TM
        # flop/byte) stays above peak_flops / HBM_BW for the generation.
        cap = 1024 if "v6" in kind else (512 if is_v7 else 256)
    else:
        cap = 128 if is_v5e else 256
    tm = cap if m >= cap else max(8, _round_up(m, 8))
    if is_v7 and m > 8:
        # Guarantee >=2 row steps so ("parallel", ...) shards across both TCs.
        while _round_up(m, tm) // tm < 2 and tm > 8:
            tm = max(8, _round_up(tm // 2, 8))
    return tm


def feed_forward_packed(x, params, *, dropout=0.0):
    """y = GELU(x @ W1.T + b1) @ W2.T + b2 with pre-packed params."""
    del dropout  # TODO(synk): train-mode Dropout via pltpu.prng_random_bits mask + 1/(1-p) scale.

    kind = _device_kind()
    is_v7 = "v7" in kind
    is_v5e = ("v5" in kind) and ("v5p" not in kind)
    compute_dtype = params["compute_dtype"]
    # v5e has no bf16 VPU/EUP -> keep the GELU epilogue in f32 there.
    epi_dtype = jnp.float32 if is_v5e else compute_dtype

    dim, hidden = params["dim"], params["hidden"]
    Kp, Hp, TH = params["Kp"], params["Hp"], params["TH"]
    num_h = Hp // TH
    streaming = num_h > 1

    orig_shape = x.shape
    M = math.prod(orig_shape[:-1])
    TM = _row_tile(M, streaming=streaming, kind=kind)
    Mp = _round_up(M, TM)
    num_m = Mp // TM

    # Cast straight to the compute dtype (no f32 round-trip); pad only if needed.
    x2 = x.reshape(M, dim).astype(compute_dtype)
    if Mp != M or Kp != dim:
        x2 = jnp.pad(x2, ((0, Mp - M), (0, Kp - dim)))

    c_bytes = jnp.dtype(compute_dtype).itemsize
    o_bytes = jnp.dtype(x.dtype).itemsize
    e_bytes = jnp.dtype(epi_dtype).itemsize

    # VMEM footprint: pipeline buffers + resident operands + scratch + live h tile.
    wmult = 2 if streaming else 1
    footprint = (
        (2 if num_m > 1 else 1) * TM * Kp * c_bytes      # x tiles
        + (2 if num_m > 1 else 1) * TM * Kp * o_bytes    # out tiles
        + wmult * 2 * Kp * TH * c_bytes                  # W1 / W2 tiles
        + wmult * TH * 4 + Kp * 4                        # b1 / b2
        + TM * Kp * 4                                    # f32 accumulator scratch
        + TM * TH * (4 + e_bytes)                        # live hidden activation
    )
    vmem_limit = max(32 << 20, int(footprint * 1.3) + (2 << 20))
    vmem_limit = min(vmem_limit, (60 << 20) if is_v7 else (100 << 20))

    if streaming:
        w1_spec = pl.BlockSpec((Kp, TH), lambda i, h: (0, h))
        b1_spec = pl.BlockSpec((1, TH), lambda i, h: (0, h))
        w2_spec = pl.BlockSpec((TH, Kp), lambda i, h: (h, 0))
    else:
        # Constant-index operands: fetched once, single-buffered (halves their VMEM).
        w1_spec = pl.BlockSpec((Kp, TH), lambda i, h: (0, 0), pipeline_mode=pl.Buffered(1))
        b1_spec = pl.BlockSpec((1, TH), lambda i, h: (0, 0), pipeline_mode=pl.Buffered(1))
        w2_spec = pl.BlockSpec((TH, Kp), lambda i, h: (0, 0), pipeline_mode=pl.Buffered(1))
    b2_spec = pl.BlockSpec((1, Kp), lambda i, h: (0, 0), pipeline_mode=pl.Buffered(1))

    cost = pl.CostEstimate(
        flops=4 * Mp * Kp * Hp,
        transcendentals=Mp * Hp,
        bytes_accessed=(Mp * Kp * (c_bytes + o_bytes)
                        + 2 * Kp * Hp * c_bytes + (Hp + Kp) * 4),
    )

    out = pl.pallas_call(
        functools.partial(_ffn_kernel, epi_dtype=epi_dtype),
        out_shape=jax.ShapeDtypeStruct((Mp, Kp), x.dtype),
        grid_spec=pltpu.PrefetchScalarGridSpec(
            num_scalar_prefetch=0,
            grid=(num_m, num_h),                                   # reduction axis last
            in_specs=[
                pl.BlockSpec((TM, Kp), lambda i, h: (i, 0)),       # x row tile
                w1_spec, b1_spec, w2_spec, b2_spec,
            ],
            out_specs=pl.BlockSpec((TM, Kp), lambda i, h: (i, 0)),
            scratch_shapes=[pltpu.VMEM((TM, Kp), jnp.float32)],
        ),
        compiler_params=pltpu.CompilerParams(
            dimension_semantics=("parallel", "arbitrary"),
            vmem_limit_bytes=vmem_limit),
        cost_estimate=cost,
    )(x2, params["w1"], params["b1"], params["w2"], params["b2"])

    if Mp != M or Kp != dim:
        out = out[:M, :dim]
    return out.reshape(orig_shape)


def feed_forward(x, lin1_w, lin1_b, lin2_w, lin2_b, *, dropout=0.0,
                 compute_dtype=jnp.bfloat16):
    """Convenience wrapper: pack params then run the fused kernel.
    Prefer calling pack_ffn_params() once and feed_forward_packed() per step."""
    params = pack_ffn_params(lin1_w, lin1_b, lin2_w, lin2_b,
                             compute_dtype=compute_dtype)
    return feed_forward_packed(x, params, dropout=dropout)


def _reference(x, lin1_w, lin1_b, lin2_w, lin2_b, *,
               compute_dtype=jnp.bfloat16, epi_dtype=jnp.bfloat16):
    # Pure-JAX reference mirroring the kernel's numerics (bf16 MXU inputs,
    # f32 accumulate, epilogue-dtype GELU).
    f32 = jnp.float32
    xc = x.astype(compute_dtype)
    w1 = lin1_w.astype(compute_dtype)
    w2 = lin2_w.astype(compute_dtype)
    h = jnp.dot(xc, w1.T, preferred_element_type=f32) + lin1_b.astype(f32)
    h = _gelu_tanh(h.astype(epi_dtype)).astype(compute_dtype)
    y = jnp.dot(h, w2.T, preferred_element_type=f32) + lin2_b.astype(f32)
    return y.astype(x.dtype)


if __name__ == "__main__":
    # small shapes consistent with the module: batch=2, seq=8, dim=32, hidden_dim=64
    batch, seq, dim, hidden_dim = 2, 8, 32, 64

    key = jax.random.PRNGKey(0)
    kx, kw1, kb1, kw2, kb2 = jax.random.split(key, 5)

    x = jax.random.normal(kx, (batch, seq, dim), jnp.float32)
    lin1_w = jax.random.normal(kw1, (hidden_dim, dim), jnp.float32) * 0.1
    lin1_b = jax.random.normal(kb1, (hidden_dim,), jnp.float32) * 0.1
    lin2_w = jax.random.normal(kw2, (dim, hidden_dim), jnp.float32) * 0.1
    lin2_b = jax.random.normal(kb2, (dim,), jnp.float32) * 0.1

    params = pack_ffn_params(lin1_w, lin1_b, lin2_w, lin2_b)   # pack once, reuse
    out = feed_forward_packed(x, params, dropout=0.1)          # dropout: identity (eval)
    out = jax.block_until_ready(out)

    kind = _device_kind()
    epi_dtype = jnp.float32 if ("v5" in kind and "v5p" not in kind) else jnp.bfloat16
    ref = _reference(x, lin1_w, lin1_b, lin2_w, lin2_b, epi_dtype=epi_dtype)

    assert out.shape == x.shape
    max_err = float(jnp.max(jnp.abs(out - ref)))
    assert jnp.allclose(out, ref, atol=1e-2, rtol=2e-2), max_err

    print("KERNEL_OK")
</pallas_src>

<mosaic_0001>
module attributes {stable_mosaic.version = 11 : i64} {
  func.func @_ffn_kernel(%arg0: i32, %arg1: i32, %arg2: memref<16x128xbf16, #tpu.memory_space<vmem>>, %arg3: memref<128x128xbf16, #tpu.memory_space<vmem>>, %arg4: memref<1x128xf32, #tpu.memory_space<vmem>>, %arg5: memref<128x128xbf16, #tpu.memory_space<vmem>>, %arg6: memref<1x128xf32, #tpu.memory_space<vmem>>, %arg7: memref<16x128xf32, #tpu.memory_space<vmem>>, %arg8: memref<16x128xf32, #tpu.memory_space<vmem>>) attributes {dimension_semantics = [#tpu.dimension_semantics<parallel>, #tpu.dimension_semantics<arbitrary>], iteration_bounds = array<i64: 1, 1>, scalar_prefetch = 0 : i64, scratch_operands = 1 : i64, tpu.core_type = #tpu.core_type<tc>, window_params = [{transform_indices = @transform_0, window_bounds = array<i64: 16, 128>}, {pipeline_mode = #tpu.pipeline_mode<synchronous>, transform_indices = @transform_1, window_bounds = array<i64: 128, 128>}, {pipeline_mode = #tpu.pipeline_mode<synchronous>, transform_indices = @transform_2, window_bounds = array<i64: 1, 128>}, {pipeline_mode = #tpu.pipeline_mode<synchronous>, transform_indices = @transform_3, window_bounds = array<i64: 128, 128>}, {pipeline_mode = #tpu.pipeline_mode<synchronous>, transform_indices = @transform_4, window_bounds = array<i64: 1, 128>}, {transform_indices = @transform_5, window_bounds = array<i64: 16, 128>}]} {
    %c0_i32 = arith.constant 0 : i32
    %0 = arith.cmpi eq, %arg1, %c0_i32 : i32
    %1 = arith.extui %0 : i1 to i32
    %c0_i32_0 = arith.constant 0 : i32
    %2 = arith.cmpi ne, %1, %c0_i32_0 : i32
    scf.if %2 {
      %cst_19 = arith.constant 0.000000e+00 : f32
      %31 = vector.broadcast %cst_19 : f32 to vector<16x128xf32>
      %c0_20 = arith.constant 0 : index
      %c0_21 = arith.constant 0 : index
      %32 = vector.load %arg8[%c0_20, %c0_21] : memref<16x128xf32, #tpu.memory_space<vmem>>, vector<16x128xf32>
      tpu.vector_store %arg8[%c0_20, %c0_21], %31 {strides = array<i32>} : memref<16x128xf32, #tpu.memory_space<vmem>>, vector<16x128xf32>,
    } else {
    }
    %c0 = arith.constant 0 : index
    %c0_1 = arith.constant 0 : index
    %3 = vector.load %arg2[%c0, %c0_1] : memref<16x128xbf16, #tpu.memory_space<vmem>>, vector<16x128xbf16>
    %c0_2 = arith.constant 0 : index
    %c0_3 = arith.constant 0 : index
    %4 = vector.load %arg3[%c0_2, %c0_3] : memref<128x128xbf16, #tpu.memory_space<vmem>>, vector<128x128xbf16>
    %cst = arith.constant dense<0.000000e+00> : vector<16x128xf32>
    %5 = tpu.matmul %3, %4, %cst {dimension_numbers = #tpu.dot_dimension_numbers<[1], [0], [0], [1], [0, 0, 1, 1], [], []>} : vector<16x128xbf16>, vector<128x128xbf16>, vector<16x128xf32> -> vector<16x128xf32>
    %c0_4 = arith.constant 0 : index
    %c0_5 = arith.constant 0 : index
    %6 = vector.load %arg4[%c0_4, %c0_5] : memref<1x128xf32, #tpu.memory_space<vmem>>, vector<1x128xf32>
    %7 = vector.broadcast %6 : vector<1x128xf32> to vector<16x128xf32>
    %8 = arith.addf %5, %7 : vector<16x128xf32>
    %9 = arith.truncf %8 : vector<16x128xf32> to vector<16x128xbf16>
    %cst_6 = arith.constant 5.000000e-01 : bf16
    %10 = vector.broadcast %cst_6 : bf16 to vector<16x128xbf16>
    %11 = arith.mulf %10, %9 : vector<16x128xbf16>
    %cst_7 = arith.constant 4.467770e-02 : bf16
    %12 = vector.broadcast %cst_7 : bf16 to vector<16x128xbf16>
    %13 = arith.mulf %12, %9 : vector<16x128xbf16>
    %14 = arith.mulf %13, %9 : vector<16x128xbf16>
    %15 = arith.mulf %14, %9 : vector<16x128xbf16>
    %16 = arith.addf %9, %15 : vector<16x128xbf16>
    %cst_8 = arith.constant 7.968750e-01 : bf16
    %17 = vector.broadcast %cst_8 : bf16 to vector<16x128xbf16>
    %18 = arith.mulf %17, %16 : vector<16x128xbf16>
    %19 = math.tanh %18 : vector<16x128xbf16>
    %cst_9 = arith.constant 1.000000e+00 : bf16
    %20 = vector.broadcast %cst_9 : bf16 to vector<16x128xbf16>
    %21 = arith.addf %20, %19 : vector<16x128xbf16>
    %22 = arith.mulf %11, %21 : vector<16x128xbf16>
    %c0_10 = arith.constant 0 : index
    %c0_11 = arith.constant 0 : index
    %23 = vector.load %arg8[%c0_10, %c0_11] : memref<16x128xf32, #tpu.memory_space<vmem>>, vector<16x128xf32>
    %c0_12 = arith.constant 0 : index
    %c0_13 = arith.constant 0 : index
    %24 = vector.load %arg5[%c0_12, %c0_13] : memref<128x128xbf16, #tpu.memory_space<vmem>>, vector<128x128xbf16>
    %cst_14 = arith.constant dense<0.000000e+00> : vector<16x128xf32>
    %25 = tpu.matmul %22, %24, %cst_14 {dimension_numbers = #tpu.dot_dimension_numbers<[1], [0], [0], [1], [0, 0, 1, 1], [], []>} : vector<16x128xbf16>, vector<128x128xbf16>, vector<16x128xf32> -> vector<16x128xf32>
    %26 = arith.addf %23, %25 : vector<16x128xf32>
    %c0_15 = arith.constant 0 : index
    %c0_16 = arith.constant 0 : index
    %27 = vector.load %arg8[%c0_15, %c0_16] : memref<16x128xf32, #tpu.memory_space<vmem>>, vector<16x128xf32>
    tpu.vector_store %arg8[%c0_15, %c0_16], %26 {strides = array<i32>} : memref<16x128xf32, #tpu.memory_space<vmem>>, vector<16x128xf32>,
    %c0_i32_17 = arith.constant 0 : i32
    %28 = arith.cmpi eq, %arg1, %c0_i32_17 : i32
    %29 = arith.extui %28 : i1 to i32
    %c0_i32_18 = arith.constant 0 : i32
    %30 = arith.cmpi ne, %29, %c0_i32_18 : i32
    scf.if %30 {
      %c0_19 = arith.constant 0 : index
      %c0_20 = arith.constant 0 : index
      %31 = vector.load %arg8[%c0_19, %c0_20] : memref<16x128xf32, #tpu.memory_space<vmem>>, vector<16x128xf32>
      %c0_21 = arith.constant 0 : index
      %c0_22 = arith.constant 0 : index
      %32 = vector.load %arg6[%c0_21, %c0_22] : memref<1x128xf32, #tpu.memory_space<vmem>>, vector<1x128xf32>
      %33 = vector.broadcast %32 : vector<1x128xf32> to vector<16x128xf32>
      %34 = arith.addf %31, %33 : vector<16x128xf32>
      %c0_23 = arith.constant 0 : index
      %c0_24 = arith.constant 0 : index
      %35 = vector.load %arg7[%c0_23, %c0_24] : memref<16x128xf32, #tpu.memory_space<vmem>>, vector<16x128xf32>
      tpu.vector_store %arg7[%c0_23, %c0_24], %34 {strides = array<i32>} : memref<16x128xf32, #tpu.memory_space<vmem>>, vector<16x128xf32>,
    } else {
    }
    return
  }
  func.func @transform_0(%arg0: i32, %arg1: i32) -> (i32, i32) {
    %c0_i32 = arith.constant 0 : i32
    %c0_i32_0 = arith.constant 0 : i32
    return %arg0, %c0_i32 : i32, i32
  }
  func.func @transform_1(%arg0: i32, %arg1: i32) -> (i32, i32) {
    %c0_i32 = arith.constant 0 : i32
    %c0_i32_0 = arith.constant 0 : i32
    %c0_i32_1 = arith.constant 0 : i32
    return %c0_i32, %c0_i32_0 : i32, i32
  }
  func.func @transform_2(%arg0: i32, %arg1: i32) -> (i32, i32) {
    %c0_i32 = arith.constant 0 : i32
    %c0_i32_0 = arith.constant 0 : i32
    %c0_i32_1 = arith.constant 0 : i32
    return %c0_i32, %c0_i32_0 : i32, i32
  }
  func.func @transform_3(%arg0: i32, %arg1: i32) -> (i32, i32) {
    %c0_i32 = arith.constant 0 : i32
    %c0_i32_0 = arith.constant 0 : i32
    %c0_i32_1 = arith.constant 0 : i32
    return %c0_i32, %c0_i32_0 : i32, i32
  }
  func.func @transform_4(%arg0: i32, %arg1: i32) -> (i32, i32) {
    %c0_i32 = arith.constant 0 : i32
    %c0_i32_0 = arith.constant 0 : i32
    %c0_i32_1 = arith.constant 0 : i32
    return %c0_i32, %c0_i32_0 : i32, i32
  }
  func.func @transform_5(%arg0: i32, %arg1: i32) -> (i32, i32) {
    %c0_i32 = arith.constant 0 : i32
    %c0_i32_0 = arith.constant 0 : i32
    return %arg0, %c0_i32 : i32, i32
  }
}

</mosaic_0001>

<llo_original>
// kernel: tpu_custom_call.1
$region0: #{tpu_custom_call.1}
  #allocation0 [shape = 'u32[]', space=smem, size = 0x4, offset = 0x4, fixed_abs, tag = 'smem constant byte address 0x4 - core index']
  #allocation1 [shape = 'u32[144,128]{1,0:T(1,128)}', space=vmem, size = 0x12000, scoped, tag = 'internal scratch']
  #allocation2 [shape = 'f32[16,128]{1,0:T(8,128)}', space=vmem, size = 0x2000, scoped, tag = 'scratch operand']
  %s0 = inlined_call_operand.hbm [shape: bf16[16,128], index: 0, kind: input, shape index: {}]
  %s1 = inlined_call_operand.hbm [shape: bf16[128,128], index: 1, kind: input, shape index: {}]
  %s2 = inlined_call_operand.vmem [shape: f32[1,128], index: 2, kind: input, shape index: {}]
  %s3 = inlined_call_operand.hbm [shape: bf16[128,128], index: 3, kind: input, shape index: {}]
  %s4 = inlined_call_operand.vmem [shape: f32[1,128], index: 4, kind: input, shape index: {}]
  %s5 = inlined_call_operand.hbm [shape: f32[16,128], index: 5, kind: output, shape index: {}]
  %s6 = sld [smem:[#allocation0]]
  $region50: #{tpu_custom_call.1} parent=0
    _
  %s8 = ssub.s32 1, %s6
  %s9 = scalar_select 0, %s8, %s6
  $region1: #{tpu_custom_call.1} parent=0
    #allocation3 [shape = 'u8[4096]{0}', space=vmem, size = 0x1000, scoped, tag = 'input window, operand 0, single buffered']
    #allocation4 [shape = 's32[1]{0}', space=sflag, size = 0x4, scoped, tag = 'scoped memory for tpu_custom_call.1']
    #allocation5 [shape = 's32[1]{0}', space=sflag, size = 0x4, scoped, tag = 'scoped memory for tpu_custom_call.1']
    #allocation6 [shape = 'u8[32768]{0}', space=vmem, size = 0x8000, scoped, tag = 'input window, operand 1, single buffered']
    #allocation7 [shape = 's32[1]{0}', space=sflag, size = 0x4, scoped, tag = 'scoped memory for tpu_custom_call.1']
    #allocation8 [shape = 'u8[32768]{0}', space=vmem, size = 0x8000, scoped, tag = 'input window, operand 3, single buffered']
    #allocation9 [shape = 'u8[8192]{0}', space=vmem, size = 0x2000, scoped, tag = 'output window, operand 0, single buffered']
    %10 = vsyncpa [#allocation4], 0
    %11 = vsyncpa [#allocation7], 0
    %12 = vsyncpa [#allocation5], 0
    // Predicated region
    $region2: #{tpu_custom_call.1} parent=1 // pred_check
      _
    $region3: #{tpu_custom_call.1} parent=1 // pred_check_branch
      %14 = sbr.rel (0) target = $region5
    $region4: #{tpu_custom_call.1} parent=1 // pred_region
      %s16 = ssub.s32 128, 128
      %17 = vsyncadd [#allocation4], %s16
      %s18 = sshll.u32 [#allocation3], 4
      %s19 = int_to_ptr.vmem [resolvable:$true] %s18
      %24 = dma.hbm_to_vmem [thread:$0]  %s0, 128, %s19, [#allocation4], 64, 64, 4
    $region5: #{tpu_custom_call.1} parent=1 // pred_fallthru
      _
    // Predicated region
    $region6: #{tpu_custom_call.1} parent=1 // pred_check
      _
    $region7: #{tpu_custom_call.1} parent=1 // pred_check_branch
      %26 = sbr.rel (0) target = $region9
    $region8: #{tpu_custom_call.1} parent=1 // pred_region
      %s28 = ssub.s32 1024, 1024
      %29 = vsyncadd [#allocation7], %s28
      %s30 = sshll.u32 [#allocation6], 4
      %s31 = int_to_ptr.vmem [resolvable:$true] %s30
      %36 = dma.hbm_to_vmem [thread:$0]  %s1, 1024, %s31, [#allocation7], 64, 64, 4
    $region9: #{tpu_custom_call.1} parent=1 // pred_fallthru
      _
    // Predicated region
    $region10: #{tpu_custom_call.1} parent=1 // pred_check
      _
    $region11: #{tpu_custom_call.1} parent=1 // pred_check_branch
      %38 = sbr.rel (0) target = $region13
    $region12: #{tpu_custom_call.1} parent=1 // pred_region
      _
    $region13: #{tpu_custom_call.1} parent=1 // pred_fallthru
      _
    // Predicated region
    $region14: #{tpu_custom_call.1} parent=1 // pred_check
      _
    $region15: #{tpu_custom_call.1} parent=1 // pred_check_branch
      %40 = sbr.rel (0) target = $region17
    $region16: #{tpu_custom_call.1} parent=1 // pred_region
      %s42 = ssub.s32 1024, 1024
      %43 = vsyncadd [#allocation7], %s42
      %s44 = sshll.u32 [#allocation8], 4
      %s45 = int_to_ptr.vmem [resolvable:$true] %s44
      %50 = dma.hbm_to_vmem [thread:$0]  %s3, 1024, %s45, [#allocation7], 64, 64, 4
    $region17: #{tpu_custom_call.1} parent=1 // pred_fallthru
      _
    // Predicated region
    $region18: #{tpu_custom_call.1} parent=1 // pred_check
      _
    $region19: #{tpu_custom_call.1} parent=1 // pred_check_branch
      %52 = sbr.rel (0) target = $region21
    $region20: #{tpu_custom_call.1} parent=1 // pred_region
      _
    $region21: #{tpu_custom_call.1} parent=1 // pred_fallthru
      _
    // Predicated region
    $region22: #{tpu_custom_call.1} parent=1 // pred_check
      _
    $region23: #{tpu_custom_call.1} parent=1 // pred_check_branch
      %54 = sbr.rel (0) target = $region25
    $region24: #{tpu_custom_call.1} parent=1 // pred_region
      %55 = dma.done [#allocation4], 128
    $region25: #{tpu_custom_call.1} parent=1 // pred_fallthru
      _
    // Predicated region
    $region26: #{tpu_custom_call.1} parent=1 // pred_check
      _
    $region27: #{tpu_custom_call.1} parent=1 // pred_check_branch
      %57 = sbr.rel (0) target = $region29
    $region28: #{tpu_custom_call.1} parent=1 // pred_region
      %58 = dma.done [#allocation7], 1024
    $region29: #{tpu_custom_call.1} parent=1 // pred_fallthru
      _
    // Predicated region
    $region30: #{tpu_custom_call.1} parent=1 // pred_check
      _
    $region31: #{tpu_custom_call.1} parent=1 // pred_check_branch
      %60 = sbr.rel (0) target = $region33
    $region32: #{tpu_custom_call.1} parent=1 // pred_region
      %61 = dma.done [#allocation7], 1024
    $region33: #{tpu_custom_call.1} parent=1 // pred_fallthru
      _
    %p67 = scmp.eq.s32.totalorder 0, 0
    // Predicated region
    $region34: #{tpu_custom_call.1} parent=1 // pred_check
      %p68 = pneg %p67
    $region35: #{tpu_custom_call.1} parent=1 // pred_check_branch
      %70 = sbr.rel (%p68) target = $region37
    $region36: #{tpu_custom_call.1} parent=1 // pred_region
      %71 = vst [vmem:[#allocation2] sm:$0xff] 0.0
      %72 = vst [vmem:[#allocation2 + $0x8] sm:$0xff] 0.0
    $region37: #{tpu_custom_call.1} parent=1 // pred_fallthru
      _
    %v73 = vld [vmem:[#allocation3] sm:$0xf]
    %v74 = vld [vmem:[#allocation3 + $0x4] sm:$0xf]
    %v75 = vld [vmem:[#allocation6] sm:$0xf]
    %v76 = vld [vmem:[#allocation6 + $0x4] sm:$0xf]
    %v77 = vld [vmem:[#allocation6 + $0x8] sm:$0xf]
    %v78 = vld [vmem:[#allocation6 + $0xc] sm:$0xf]
    %v79 = vld [vmem:[#allocation6 + $0x10] sm:$0xf]
    %v80 = vld [vmem:[#allocation6 + $0x14] sm:$0xf]
    %v81 = vld [vmem:[#allocation6 + $0x18] sm:$0xf]
    %v82 = vld [vmem:[#allocation6 + $0x1c] sm:$0xf]
    %v83 = vld [vmem:[#allocation6 + $0x20] sm:$0xf]
    %v84 = vld [vmem:[#allocation6 + $0x24] sm:$0xf]
    %v85 = vld [vmem:[#allocation6 + $0x28] sm:$0xf]
    %v86 = vld [vmem:[#allocation6 + $0x2c] sm:$0xf]
    %v87 = vld [vmem:[#allocation6 + $0x30] sm:$0xf]
    %v88 = vld [vmem:[#allocation6 + $0x34] sm:$0xf]
    %v89 = vld [vmem:[#allocation6 + $0x38] sm:$0xf]
    %v90 = vld [vmem:[#allocation6 + $0x3c] sm:$0xf]
    %v91 = vld [vmem:[%s2] sm:$0x1]
    %v93 = vlaneseq
    %v94 = vshrl.u32 %v93, 7
    %v95 = vsub.s32 0, %v94
    %v96 = vrot.slane %v91, %v95
    %v100 = vunpack.c.l.b16 %v73
    %v101 = vunpack.c.l.b16 %v74
    %v102 = vpack.c.b16 %v101, %v100
    %v120 = vunpack.c.l.b16 %v75
    %v121 = vunpack.c.l.b16 %v76
    %v122 = vunpack.c.l.b16 %v77
    %v123 = vunpack.c.l.b16 %v78
    %v124 = vunpack.c.l.b16 %v79
    %v125 = vunpack.c.l.b16 %v80
    %v126 = vunpack.c.l.b16 %v81
    %v127 = vunpack.c.l.b16 %v82
    %v128 = vunpack.c.l.b16 %v83
    %v129 = vunpack.c.l.b16 %v84
    %v130 = vunpack.c.l.b16 %v85
    %v131 = vunpack.c.l.b16 %v86
    %v132 = vunpack.c.l.b16 %v87
    %v133 = vunpack.c.l.b16 %v88
    %v134 = vunpack.c.l.b16 %v89
    %v135 = vunpack.c.l.b16 %v90
    %v136 = vpack.c.b16 %v121, %v120
    %v137 = vpack.c.b16 %v123, %v122
    %v138 = vpack.c.b16 %v125, %v124
    %v139 = vpack.c.b16 %v127, %v126
    %v140 = vpack.c.b16 %v129, %v128
    %v141 = vpack.c.b16 %v131, %v130
    %v142 = vpack.c.b16 %v133, %v132
    %v143 = vpack.c.b16 %v135, %v134
    %152 = vmatprep.subr.bf16.mxu0 0
    %153 = vmatpush1.bf16.msra.mxu0 %v143
    %154 = vmatprep.subr.bf16.mxu0 0
    %155 = vmatpush1.bf16.msra.mxu0 %v142
    %156 = vmatprep.subr.bf16.mxu0 0
    %157 = vmatpush1.bf16.msra.mxu0 %v141
    %158 = vmatprep.subr.bf16.mxu0 0
    %159 = vmatpush1.bf16.msra.mxu0 %v140
    %160 = vmatprep.subr.bf16.mxu0 0
    %161 = vmatpush1.bf16.msra.mxu0 %v139
    %162 = vmatprep.subr.bf16.mxu0 0
    %163 = vmatpush1.bf16.msra.mxu0 %v138
    %164 = vmatprep.subr.bf16.mxu0 0
    %165 = vmatpush1.bf16.msra.mxu0 %v137
    %166 = vmatprep.subr.bf16.mxu0 0
    %167 = vmatpush1.bf16.msra.mxu0 %v136
    %168 = vmatprep.subr.bf16.mxu0 0
    %169 = vmatpush2.bf16.msra.mxu0 0
    %170 = vmatprep.subr.bf16.mxu0 0
    %171 = vmatpush2.bf16.msra.mxu0 0
    %172 = vmatprep.subr.bf16.mxu0 0
    %173 = vmatpush2.bf16.msra.mxu0 0
    %174 = vmatprep.subr.bf16.mxu0 0
    %175 = vmatpush2.bf16.msra.mxu0 0
    %176 = vmatprep.subr.bf16.mxu0 0
    %177 = vmatpush2.bf16.msra.mxu0 0
    %178 = vmatprep.subr.bf16.mxu0 0
    %179 = vmatpush2.bf16.msra.mxu0 0
    %180 = vmatprep.subr.bf16.mxu0 0
    %181 = vmatpush2.bf16.msra.mxu0 0
    %182 = vmatprep.subr.bf16.mxu0 0
    %183 = vmatpush2.bf16.msra.mxu0 0
    %184 = vmatprep.mubr.bf16.mxu0 0
    %185 = vmatmul.mubr.bf16.gmra.mxu0 %v102
    %v186 = vpop.f32.mrf.mxu0
    %v187 = vadd.f32 %v96, %v186
    %v188 = vpop.f32.mrf.mxu0
    %v189 = vpop.f32.mrf.mxu0
    %v190 = vadd.f32 %v96, %v189
    %v191 = vpop.f32.mrf.mxu0
    %192 = vdwg.mxu0
    %v193 = vpack.c.bf16 %v190, %v187
    %v194 = vmul.bf16 %v193, 1056980736
    %v195 = vmul.bf16 %v193, 1027030327
    %v196 = vmul.bf16 %v195, %v193
    %v197 = vmul.bf16 %v196, %v193
    %v198 = vadd.bf16 %v193, %v197
    %v199 = vmul.bf16 %v198, 1061961548
    %v200 = vtanh.bf16.pop %v199
    %v201 = vadd.bf16 %v200, 1065369472
    %v202 = vmul.bf16 %v194, %v201
    %v203 = vld [vmem:[#allocation2] sm:$0xff]
    %v204 = vld [vmem:[#allocation2 + $0x8] sm:$0xff]
    %v205 = vld [vmem:[#allocation8] sm:$0xf]
    %v206 = vld [vmem:[#allocation8 + $0x4] sm:$0xf]
    %v207 = vld [vmem:[#allocation8 + $0x8] sm:$0xf]
    %v208 = vld [vmem:[#allocation8 + $0xc] sm:$0xf]
    %v209 = vld [vmem:[#allocation8 + $0x10] sm:$0xf]
    %v210 = vld [vmem:[#allocation8 + $0x14] sm:$0xf]
    %v211 = vld [vmem:[#allocation8 + $0x18] sm:$0xf]
    %v212 = vld [vmem:[#allocation8 + $0x1c] sm:$0xf]
    %v213 = vld [vmem:[#allocation8 + $0x20] sm:$0xf]
    %v214 = vld [vmem:[#allocation8 + $0x24] sm:$0xf]
    %v215 = vld [vmem:[#allocation8 + $0x28] sm:$0xf]
    %v216 = vld [vmem:[#allocation8 + $0x2c] sm:$0xf]
    %v217 = vld [vmem:[#allocation8 + $0x30] sm:$0xf]
    %v218 = vld [vmem:[#allocation8 + $0x34] sm:$0xf]
    %v219 = vld [vmem:[#allocation8 + $0x38] sm:$0xf]
    %v220 = vld [vmem:[#allocation8 + $0x3c] sm:$0xf]
    %v237 = vunpack.c.l.b16 %v205
    %v238 = vunpack.c.l.b16 %v206
    %v239 = vunpack.c.l.b16 %v207
    %v240 = vunpack.c.l.b16 %v208
    %v241 = vunpack.c.l.b16 %v209
    %v242 = vunpack.c.l.b16 %v210
    %v243 = vunpack.c.l.b16 %v211
    %v244 = vunpack.c.l.b16 %v212
    %v245 = vunpack.c.l.b16 %v213
    %v246 = vunpack.c.l.b16 %v214
    %v247 = vunpack.c.l.b16 %v215
    %v248 = vunpack.c.l.b16 %v216
    %v249 = vunpack.c.l.b16 %v217
    %v250 = vunpack.c.l.b16 %v218
    %v251 = vunpack.c.l.b16 %v219
    %v252 = vunpack.c.l.b16 %v220
    %v253 = vpack.c.b16 %v238, %v237
    %v254 = vpack.c.b16 %v240, %v239
    %v255 = vpack.c.b16 %v242, %v241
    %v256 = vpack.c.b16 %v244, %v243
    %v257 = vpack.c.b16 %v246, %v245
    %v258 = vpack.c.b16 %v248, %v247
    %v259 = vpack.c.b16 %v250, %v249
    %v260 = vpack.c.b16 %v252, %v251
    %269 = vmatprep.subr.bf16.mxu0 0
    %270 = vmatpush1.bf16.msra.mxu0 %v260
    %271 = vmatprep.subr.bf16.mxu0 0
    %272 = vmatpush1.bf16.msra.mxu0 %v259
    %273 = vmatprep.subr.bf16.mxu0 0
    %274 = vmatpush1.bf16.msra.mxu0 %v258
    %275 = vmatprep.subr.bf16.mxu0 0
    %276 = vmatpush1.bf16.msra.mxu0 %v257
    %277 = vmatprep.subr.bf16.mxu0 0
    %278 = vmatpush1.bf16.msra.mxu0 %v256
    %279 = vmatprep.subr.bf16.mxu0 0
    %280 = vmatpush1.bf16.msra.mxu0 %v255
    %281 = vmatprep.subr.bf16.mxu0 0
    %282 = vmatpush1.bf16.msra.mxu0 %v254
    %283 = vmatprep.subr.bf16.mxu0 0
    %284 = vmatpush1.bf16.msra.mxu0 %v253
    %285 = vmatprep.subr.bf16.mxu0 0
    %286 = vmatpush2.bf16.msra.mxu0 0
    %287 = vmatprep.subr.bf16.mxu0 0
    %288 = vmatpush2.bf16.msra.mxu0 0
    %289 = vmatprep.subr.bf16.mxu0 0
    %290 = vmatpush2.bf16.msra.mxu0 0
    %291 = vmatprep.subr.bf16.mxu0 0
    %292 = vmatpush2.bf16.msra.mxu0 0
    %293 = vmatprep.subr.bf16.mxu0 0
    %294 = vmatpush2.bf16.msra.mxu0 0
    %295 = vmatprep.subr.bf16.mxu0 0
    %296 = vmatpush2.bf16.msra.mxu0 0
    %297 = vmatprep.subr.bf16.mxu0 0
    %298 = vmatpush2.bf16.msra.mxu0 0
    %299 = vmatprep.subr.bf16.mxu0 0
    %300 = vmatpush2.bf16.msra.mxu0 0
    %301 = vmatprep.mubr.bf16.mxu0 0
    %302 = vmatmul.mubr.bf16.gmra.mxu0 %v202
    %v303 = vpop.f32.mrf.mxu0
    %v304 = vadd.f32 0.0, %v303
    %v305 = vpop.f32.mrf.mxu0
    %v306 = vpop.f32.mrf.mxu0
    %v307 = vadd.f32 0.0, %v306
    %v308 = vpop.f32.mrf.mxu0
    %309 = vdwg.mxu0
    %v310 = vadd.f32 %v203, %v304
    %v311 = vadd.f32 %v204, %v307
    %312 = vst [vmem:[#allocation2] sm:$0xff] %v310
    %313 = vst [vmem:[#allocation2 + $0x8] sm:$0xff] %v311
    // Predicated region
    $region38: #{tpu_custom_call.1} parent=1 // pred_check
      %p314 = pneg %p67
    $region39: #{tpu_custom_call.1} parent=1 // pred_check_branch
      %316 = sbr.rel (%p314) target = $region41
    $region40: #{tpu_custom_call.1} parent=1 // pred_region
      %v317 = vld [vmem:[#allocation2] sm:$0xff]
      %v318 = vld [vmem:[#allocation2 + $0x8] sm:$0xff]
      %v319 = vld [vmem:[%s4] sm:$0x1]
      %v321 = vlaneseq
      %v322 = vshrl.u32 %v321, 7
      %v323 = vsub.s32 0, %v322
      %v324 = vrot.slane %v319, %v323
      %v326 = vadd.f32 %v317, %v324
      %v327 = vadd.f32 %v318, %v324
      %328 = vst [vmem:[#allocation9] sm:$0xff] %v326
      %329 = vst [vmem:[#allocation9 + $0x8] sm:$0xff] %v327
    $region41: #{tpu_custom_call.1} parent=1 // pred_fallthru
      _
    // Predicated region
    $region42: #{tpu_custom_call.1} parent=1 // pred_check
      _
    $region43: #{tpu_custom_call.1} parent=1 // pred_check_branch
      %331 = sbr.rel (0) target = $region45
    $region44: #{tpu_custom_call.1} parent=1 // pred_region
      %s333 = ssub.s32 256, 256
      %334 = vsyncadd [#allocation5], %s333
      %s335 = sshll.u32 [#allocation9], 4
      %s336 = int_to_ptr.vmem [resolvable:$true] %s335
      %341 = dma.vmem_to_hbm [thread:$0]  %s336, 256, %s5, [#allocation5], 128, 128, 8
    $region45: #{tpu_custom_call.1} parent=1 // pred_fallthru
      _
    // Predicated region
    $region46: #{tpu_custom_call.1} parent=1 // pred_check
      _
    $region47: #{tpu_custom_call.1} parent=1 // pred_check_branch
      %343 = sbr.rel (0) target = $region49
    $region48: #{tpu_custom_call.1} parent=1 // pred_region
      %344 = dma.done [#allocation5], 256
    $region49: #{tpu_custom_call.1} parent=1 // pred_fallthru
      _
    %345 = vsyncpa [#allocation4], 1
    %346 = vsyncpa [#allocation7], 1
    %347 = vsyncpa [#allocation5], 1

</llo_original>
